<compile_context>
chip_gen: v7x
topology: tpu7x:2x2x1
jax: 0.10.0
libtpu: 0.0.40
codegen_flags: <defaults>
</compile_context>

<pallas_src>
import functools

import jax
import jax.numpy as jnp
from jax.experimental import pallas as pl
from jax.experimental.pallas import tpu as pltpu

NUM_SPECIES = 89   # length of element_atomic_numbers buffer
FEAT_DIM = 92      # CGCNN atom-feature dimension
MAX_Z = 100        # atomic numbers in the buffer go up to 94

NE_PAD = 128       # species axis padded to one lane-tile (MXU contraction dim)
F_PAD = 128        # feature axis padded to one lane-tile (lane-dense stores)
DEFAULT_MAX_TM = 1024  # node-tile rows per grid step (v7x-friendly); on
                       # single-TC chips (v5e/v6e) 2048-4096 is a small free win
MIN_TM = 256       # keep >= 2 grid steps for mid-size graphs (v7x 2-TC sharding)

# element_atomic_numbers buffer from the module __init__ (species idx -> Z)
_ELEMENT_ATOMIC_NUMBERS = [
    89, 47, 13, 18, 33, 79, 5, 56, 4, 83, 35, 6, 20, 48, 58, 17, 27, 24, 55,
    29, 66, 68, 63, 9, 26, 31, 64, 32, 1, 2, 72, 80, 67, 53, 49, 77, 19, 36,
    57, 3, 71, 12, 25, 42, 7, 11, 41, 60, 10, 28, 93, 8, 76, 15, 91, 82, 46,
    61, 59, 78, 94, 37, 75, 45, 44, 16, 51, 21, 34, 14, 62, 50, 38, 73, 65,
    43, 52, 90, 22, 81, 69, 92, 23, 74, 54, 39, 70, 30, 40,
]


def _embed_kernel(idx_ref, t_hi_ref, t_mid_ref, t_lo_ref, out_ref):
    """out[i, :] = table[idx[i], :] via one-hot @ (3-way bf16 split) on the MXU.

    idx_ref    : (TM, 1)    int32    (VMEM)
    t_*_ref    : (128, 128) bfloat16 (VMEM, resident across the grid)
    out_ref    : (TM, 128)  out dtype (VMEM)
    """
    tm = out_ref.shape[0]
    ne = t_hi_ref.shape[0]
    idx = idx_ref[...]                                            # (TM, 1)
    species = jax.lax.broadcasted_iota(jnp.int32, (tm, ne), 1)    # lanes = species
    # 0/1 are exact in bf16, so each DEFAULT-precision bf16 matmul reproduces
    # the selected bf16 table plane exactly in the f32 accumulator.
    onehot = (species == idx).astype(jnp.bfloat16)                # (TM, 128)
    acc = jnp.dot(onehot, t_hi_ref[...], preferred_element_type=jnp.float32)
    acc = acc + jnp.dot(onehot, t_mid_ref[...], preferred_element_type=jnp.float32)
    acc = acc + jnp.dot(onehot, t_lo_ref[...], preferred_element_type=jnp.float32)
    out_ref[...] = acc.astype(out_ref.dtype)


def make_cgcnn_embedding(element_atomic_numbers, cgcnn_table, *,
                         max_tm=DEFAULT_MAX_TM, out_dtype=jnp.float32):
    """Build a forward(inp) closure with the padded per-species table baked in.

    Parameter glue (table[Z[species]] fold, zero-pad to (128, 128), 3-way bf16
    split) runs once here, not per forward call.

    max_tm    : rows per grid step.  1024 keeps >=2 parallel steps on v7x for
                mid-size graphs; v5e/v6e (single TC, serial grid) may pass
                2048-4096 to amortize per-step overhead.
    out_dtype : dtype of the kernel's HBM store.  Use jnp.bfloat16 when the
                table is the binary atom_init.json encoding (exactly
                representable) to halve the store bytes; default float32.
    """
    element_atomic_numbers = jnp.asarray(element_atomic_numbers, jnp.int32)
    per_species = jnp.asarray(cgcnn_table, jnp.float32)[element_atomic_numbers]
    t32 = (jnp.zeros((NE_PAD, F_PAD), jnp.float32)
           .at[:NUM_SPECIES, :FEAT_DIM].set(per_species))

    # 3-term bf16 split: hi + mid + lo reconstructs the f32 table to ~1 ulp
    # with plain DEFAULT-precision bf16 MXU passes (no 6-pass HIGHEST path).
    t_hi = t32.astype(jnp.bfloat16)
    r1 = t32 - t_hi.astype(jnp.float32)
    t_mid = r1.astype(jnp.bfloat16)
    r2 = r1 - t_mid.astype(jnp.float32)
    t_lo = r2.astype(jnp.bfloat16)
    t_hi, t_mid, t_lo = jax.block_until_ready((t_hi, t_mid, t_lo))

    out_bytes = jnp.dtype(out_dtype).itemsize

    def _padded_embed(idx_p, n_pad, tm):
        cost = pl.CostEstimate(
            flops=2 * 3 * n_pad * NE_PAD * F_PAD,
            transcendentals=0,
            bytes_accessed=n_pad * 4 + 3 * NE_PAD * F_PAD * 2
            + n_pad * F_PAD * out_bytes,
        )
        return pl.pallas_call(
            _embed_kernel,
            out_shape=jax.ShapeDtypeStruct((n_pad, F_PAD), out_dtype),
            grid=(n_pad // tm,),
            in_specs=[
                # TODO(synk): the (tm, 1) int32 index block is lane-padded in
                # VMEM; a lane-dense index layout needs a lanes->sublanes
                # relayout in-kernel that is not guaranteed to lower on all
                # Mosaic versions, so the robust layout is kept (~5-10% cost).
                pl.BlockSpec((tm, 1), lambda i: (i, 0)),
                pl.BlockSpec((NE_PAD, F_PAD), lambda i: (0, 0)),  # VMEM-resident
                pl.BlockSpec((NE_PAD, F_PAD), lambda i: (0, 0)),
                pl.BlockSpec((NE_PAD, F_PAD), lambda i: (0, 0)),
            ],
            out_specs=pl.BlockSpec((tm, F_PAD), lambda i: (i, 0)),
            compiler_params=pltpu.CompilerParams(
                dimension_semantics=("parallel",)),   # 2-TC sharding on v7x
            cost_estimate=cost,
        )(idx_p, t_hi, t_mid, t_lo)

    @functools.partial(jax.jit, static_argnames=("n_pad", "tm"))
    def _forward_impl(inp, *, n_pad, tm):
        n = inp.shape[0]
        # TODO(synk): out-of-range species (idx < 0 or >= 89) silently produce
        # zero / pad-row features instead of raising like PyTorch indexing.
        idx_p = jnp.zeros((n_pad, 1), jnp.int32).at[:n, 0].set(inp)
        out_padded = _padded_embed(idx_p, n_pad, tm)
        # Module contract: (N, 92) float32.  Inside jit this crop is a single
        # fused copy (one dispatch total).  Consumers that can read the
        # lane-dense padded buffer should use `node_feature_padded` instead
        # and skip this crop entirely; rows >= n hold species-0 features.
        embd = jax.lax.slice(out_padded, (0, 0), (n, FEAT_DIM))
        embd = embd.astype(jnp.float32)
        return embd, out_padded

    def forward(inp):
        inp = jnp.asarray(inp, jnp.int32)
        n = inp.shape[0]
        if n <= max_tm:
            # pow-2 bucketing below one tile bounds Mosaic recompiles for
            # small variable graph sizes.
            n_pad = max(8, pl.next_power_of_2(n))
        else:
            # multiple-of-tile padding for large graphs: phantom rows < 1 tile
            # (pow-2 padding would store up to ~2x phantom rows).
            n_pad = -(-n // max_tm) * max_tm
        # >= 2 parallel grid steps for mid-size graphs so both v7x TCs work.
        tm = min(n_pad, max_tm, max(MIN_TM, n_pad // 2))
        embd, out_padded = _forward_impl(inp, n_pad=n_pad, tm=tm)
        return {
            "node_feature": embd,               # data[self.key_x]
            "node_attr": embd,                  # data[self.key_additional_output]
            "atom_type": inp,                   # data[self.key_save]
            "node_feature_padded": out_padded,  # for downstream fusion
        }

    return forward


if __name__ == "__main__":
    key = jax.random.PRNGKey(0)
    k_tab, k_a, k_b, k_c = jax.random.split(key, 4)

    # Deterministic parameters / buffers.
    element_atomic_numbers = jnp.asarray(_ELEMENT_ATOMIC_NUMBERS, dtype=jnp.int32)
    cgcnn_table = jax.random.normal(k_tab, (MAX_Z, FEAT_DIM), dtype=jnp.float32)

    forward = make_cgcnn_embedding(element_atomic_numbers, cgcnn_table)

    def reference(inp):
        return cgcnn_table[element_atomic_numbers[inp]].astype(jnp.float32)

    def check(inp):
        out = forward(inp)
        jax.block_until_ready(out)
        n = inp.shape[0]
        assert out["node_feature"].shape == (n, FEAT_DIM)
        assert out["node_feature"].dtype == jnp.float32
        # 3-way bf16 split reconstructs the f32 table to ~1 ulp of f32.
        assert jnp.allclose(out["node_feature"], reference(inp),
                            atol=5e-6, rtol=0.0)
        assert jnp.array_equal(out["atom_type"], inp)
        assert jnp.allclose(out["node_attr"], out["node_feature"])
        assert out["node_feature_padded"].shape[1] == F_PAD

    # Case 1: tiny graph (N = 8) -> single tile, single grid step.
    check(jax.random.randint(k_a, (8,), 0, NUM_SPECIES, dtype=jnp.int32))

    # Case 2: mid-size graph (N = 600 -> n_pad = 1024, tm = 512, 2 parallel
    # steps) -> exercises the 2-TC-friendly tile split.
    check(jax.random.randint(k_b, (600,), 0, NUM_SPECIES, dtype=jnp.int32))

    # Case 3: large graph (N = 2500 -> n_pad = 3072 = 3 x 1024, tm = 1024)
    # -> exercises multiple-of-tile (non-pow-2) padding and a 3-step grid.
    check(jax.random.randint(k_c, (2500,), 0, NUM_SPECIES, dtype=jnp.int32))

    print("KERNEL_OK")
</pallas_src>

<mosaic_0001>
module attributes {stable_mosaic.version = 11 : i64} {
  func.func @_embed_kernel(%arg0: i32, %arg1: memref<8x1xi32, #tpu.memory_space<vmem>>, %arg2: memref<128x128xbf16, #tpu.memory_space<vmem>>, %arg3: memref<128x128xbf16, #tpu.memory_space<vmem>>, %arg4: memref<128x128xbf16, #tpu.memory_space<vmem>>, %arg5: memref<8x128xf32, #tpu.memory_space<vmem>>) attributes {dimension_semantics = [#tpu.dimension_semantics<parallel>], iteration_bounds = array<i64: 1>, scalar_prefetch = 0 : i64, scratch_operands = 0 : i64, tpu.core_type = #tpu.core_type<tc>, window_params = [{transform_indices = @transform_0, window_bounds = array<i64: 8, 1>}, {pipeline_mode = #tpu.pipeline_mode<synchronous>, transform_indices = @transform_1, window_bounds = array<i64: 128, 128>}, {pipeline_mode = #tpu.pipeline_mode<synchronous>, transform_indices = @transform_2, window_bounds = array<i64: 128, 128>}, {pipeline_mode = #tpu.pipeline_mode<synchronous>, transform_indices = @transform_3, window_bounds = array<i64: 128, 128>}, {transform_indices = @transform_4, window_bounds = array<i64: 8, 128>}]} {
    %c0 = arith.constant 0 : index
    %c0_0 = arith.constant 0 : index
    %0 = vector.load %arg1[%c0, %c0_0] : memref<8x1xi32, #tpu.memory_space<vmem>>, vector<8x1xi32>
    %1 = tpu.iota {dimensions = array<i32: 1>} : vector<8x128xi32>
    %2 = vector.broadcast %0 : vector<8x1xi32> to vector<8x128xi32>
    %3 = arith.cmpi eq, %1, %2 : vector<8x128xi32>
    %4 = arith.extui %3 : vector<8x128xi1> to vector<8x128xi32>
    %5 = arith.sitofp %4 : vector<8x128xi32> to vector<8x128xf32>
    %6 = arith.truncf %5 : vector<8x128xf32> to vector<8x128xbf16>
    %c0_1 = arith.constant 0 : index
    %c0_2 = arith.constant 0 : index
    %7 = vector.load %arg2[%c0_1, %c0_2] : memref<128x128xbf16, #tpu.memory_space<vmem>>, vector<128x128xbf16>
    %cst = arith.constant dense<0.000000e+00> : vector<8x128xf32>
    %8 = tpu.matmul %6, %7, %cst {dimension_numbers = #tpu.dot_dimension_numbers<[1], [0], [0], [1], [0, 0, 1, 1], [], []>} : vector<8x128xbf16>, vector<128x128xbf16>, vector<8x128xf32> -> vector<8x128xf32>
    %c0_3 = arith.constant 0 : index
    %c0_4 = arith.constant 0 : index
    %9 = vector.load %arg3[%c0_3, %c0_4] : memref<128x128xbf16, #tpu.memory_space<vmem>>, vector<128x128xbf16>
    %cst_5 = arith.constant dense<0.000000e+00> : vector<8x128xf32>
    %10 = tpu.matmul %6, %9, %cst_5 {dimension_numbers = #tpu.dot_dimension_numbers<[1], [0], [0], [1], [0, 0, 1, 1], [], []>} : vector<8x128xbf16>, vector<128x128xbf16>, vector<8x128xf32> -> vector<8x128xf32>
    %11 = arith.addf %8, %10 : vector<8x128xf32>
    %c0_6 = arith.constant 0 : index
    %c0_7 = arith.constant 0 : index
    %12 = vector.load %arg4[%c0_6, %c0_7] : memref<128x128xbf16, #tpu.memory_space<vmem>>, vector<128x128xbf16>
    %cst_8 = arith.constant dense<0.000000e+00> : vector<8x128xf32>
    %13 = tpu.matmul %6, %12, %cst_8 {dimension_numbers = #tpu.dot_dimension_numbers<[1], [0], [0], [1], [0, 0, 1, 1], [], []>} : vector<8x128xbf16>, vector<128x128xbf16>, vector<8x128xf32> -> vector<8x128xf32>
    %14 = arith.addf %11, %13 : vector<8x128xf32>
    %c0_9 = arith.constant 0 : index
    %c0_10 = arith.constant 0 : index
    %15 = vector.load %arg5[%c0_9, %c0_10] : memref<8x128xf32, #tpu.memory_space<vmem>>, vector<8x128xf32>
    tpu.vector_store %arg5[%c0_9, %c0_10], %14 {strides = array<i32>} : memref<8x128xf32, #tpu.memory_space<vmem>>, vector<8x128xf32>,
    return
  }
  func.func @transform_0(%arg0: i32) -> (i32, i32) {
    %c0_i32 = arith.constant 0 : i32
    %c0_i32_0 = arith.constant 0 : i32
    return %arg0, %c0_i32 : i32, i32
  }
  func.func @transform_1(%arg0: i32) -> (i32, i32) {
    %c0_i32 = arith.constant 0 : i32
    %c0_i32_0 = arith.constant 0 : i32
    %c0_i32_1 = arith.constant 0 : i32
    return %c0_i32, %c0_i32_0 : i32, i32
  }
  func.func @transform_2(%arg0: i32) -> (i32, i32) {
    %c0_i32 = arith.constant 0 : i32
    %c0_i32_0 = arith.constant 0 : i32
    %c0_i32_1 = arith.constant 0 : i32
    return %c0_i32, %c0_i32_0 : i32, i32
  }
  func.func @transform_3(%arg0: i32) -> (i32, i32) {
    %c0_i32 = arith.constant 0 : i32
    %c0_i32_0 = arith.constant 0 : i32
    %c0_i32_1 = arith.constant 0 : i32
    return %c0_i32, %c0_i32_0 : i32, i32
  }
  func.func @transform_4(%arg0: i32) -> (i32, i32) {
    %c0_i32 = arith.constant 0 : i32
    %c0_i32_0 = arith.constant 0 : i32
    return %arg0, %c0_i32 : i32, i32
  }
}

</mosaic_0001>

<llo_original>
// kernel: _forward_impl.1
$region0: #{_forward_impl.1}
  #allocation0 [shape = 'u32[]', space=smem, size = 0x4, offset = 0x4, fixed_abs, tag = 'smem constant byte address 0x4 - core index']
  #allocation1 [shape = 'u32[144,128]{1,0:T(1,128)}', space=vmem, size = 0x12000, scoped, tag = 'internal scratch']
  %s0 = inlined_call_operand.vmem [shape: s32[8,1], index: 0, kind: input, shape index: {}]
  %s1 = inlined_call_operand.hbm [shape: bf16[128,128], index: 1, kind: input, shape index: {}]
  %s2 = inlined_call_operand.hbm [shape: bf16[128,128], index: 2, kind: input, shape index: {}]
  %s3 = inlined_call_operand.hbm [shape: bf16[128,128], index: 3, kind: input, shape index: {}]
  %s4 = inlined_call_operand.vmem [shape: f32[8,128], index: 4, kind: output, shape index: {}]
  %s5 = sld [smem:[#allocation0]]
  $region38: #{_forward_impl.1} parent=0
    _
  %s7 = ssub.s32 1, %s5
  %s8 = scalar_select 0, %s7, %s5
  $region1: #{_forward_impl.1} parent=0
    #allocation2 [shape = 'u8[32768]{0}', space=vmem, size = 0x8000, scoped, tag = 'input window, operand 1, single buffered']
    #allocation3 [shape = 's32[1]{0}', space=sflag, size = 0x4, scoped, tag = 'scoped memory for _forward_impl.1']
    #allocation4 [shape = 'u8[32768]{0}', space=vmem, size = 0x8000, scoped, tag = 'input window, operand 2, single buffered']
    #allocation5 [shape = 's32[1]{0}', space=sflag, size = 0x4, scoped, tag = 'scoped memory for _forward_impl.1']
    #allocation6 [shape = 'u8[32768]{0}', space=vmem, size = 0x8000, scoped, tag = 'input window, operand 3, single buffered']
    %9 = vsyncpa [#allocation3], 0
    %10 = vsyncpa [#allocation5], 0
    // Predicated region
    $region2: #{_forward_impl.1} parent=1 // pred_check
      _
    $region3: #{_forward_impl.1} parent=1 // pred_check_branch
      %12 = sbr.rel (0) target = $region5
    $region4: #{_forward_impl.1} parent=1 // pred_region
      _
    $region5: #{_forward_impl.1} parent=1 // pred_fallthru
      _
    // Predicated region
    $region6: #{_forward_impl.1} parent=1 // pred_check
      _
    $region7: #{_forward_impl.1} parent=1 // pred_check_branch
      %14 = sbr.rel (0) target = $region9
    $region8: #{_forward_impl.1} parent=1 // pred_region
      %s16 = ssub.s32 1024, 1024
      %17 = vsyncadd [#allocation3], %s16
      %s18 = sshll.u32 [#allocation2], 4
      %s19 = int_to_ptr.vmem [resolvable:$true] %s18
      %24 = dma.hbm_to_vmem [thread:$0]  %s1, 1024, %s19, [#allocation3], 64, 64, 4
    $region9: #{_forward_impl.1} parent=1 // pred_fallthru
      _
    // Predicated region
    $region10: #{_forward_impl.1} parent=1 // pred_check
      _
    $region11: #{_forward_impl.1} parent=1 // pred_check_branch
      %26 = sbr.rel (0) target = $region13
    $region12: #{_forward_impl.1} parent=1 // pred_region
      %s28 = ssub.s32 1024, 1024
      %29 = vsyncadd [#allocation5], %s28
      %s30 = sshll.u32 [#allocation4], 4
      %s31 = int_to_ptr.vmem [resolvable:$true] %s30
      %36 = dma.hbm_to_vmem [thread:$0]  %s2, 1024, %s31, [#allocation5], 64, 64, 4
    $region13: #{_forward_impl.1} parent=1 // pred_fallthru
      _
    // Predicated region
    $region14: #{_forward_impl.1} parent=1 // pred_check
      _
    $region15: #{_forward_impl.1} parent=1 // pred_check_branch
      %38 = sbr.rel (0) target = $region17
    $region16: #{_forward_impl.1} parent=1 // pred_region
      %s40 = ssub.s32 1024, 1024
      %41 = vsyncadd [#allocation5], %s40
      %s42 = sshll.u32 [#allocation6], 4
      %s43 = int_to_ptr.vmem [resolvable:$true] %s42
      %48 = dma.hbm_to_vmem [thread:$0]  %s3, 1024, %s43, [#allocation5], 64, 64, 4
    $region17: #{_forward_impl.1} parent=1 // pred_fallthru
      _
    // Predicated region
    $region18: #{_forward_impl.1} parent=1 // pred_check
      _
    $region19: #{_forward_impl.1} parent=1 // pred_check_branch
      %50 = sbr.rel (0) target = $region21
    $region20: #{_forward_impl.1} parent=1 // pred_region
      %51 = dma.done [#allocation3], 1024
    $region21: #{_forward_impl.1} parent=1 // pred_fallthru
      _
    // Predicated region
    $region22: #{_forward_impl.1} parent=1 // pred_check
      _
    $region23: #{_forward_impl.1} parent=1 // pred_check_branch
      %53 = sbr.rel (0) target = $region25
    $region24: #{_forward_impl.1} parent=1 // pred_region
      %54 = dma.done [#allocation5], 1024
    $region25: #{_forward_impl.1} parent=1 // pred_fallthru
      _
    // Predicated region
    $region26: #{_forward_impl.1} parent=1 // pred_check
      _
    $region27: #{_forward_impl.1} parent=1 // pred_check_branch
      %56 = sbr.rel (0) target = $region29
    $region28: #{_forward_impl.1} parent=1 // pred_region
      %57 = dma.done [#allocation5], 1024
    $region29: #{_forward_impl.1} parent=1 // pred_fallthru
      _
    %v59 = vld [vmem:[%s0] sm:$0xff]
    %v60 = vlaneseq
    %v61 = vand.u32 %v60, 127
    %62 = vset.pattern.permute.xlu0 0
    %63 = vperm.xlu0 %62, %v59
    %v64 = vpop.permute.xlu0 %63
    %vm65 = vcmp.eq.s32.totalorder %v61, %v64
    %v66 = vsel %vm65, 1, 0
    %v67 = vcvt.s32.f32 %v66
    %v68 = vpack.c.bf16 %v67, %v67
    %v69 = vld [vmem:[#allocation2] sm:$0xf]
    %v70 = vld [vmem:[#allocation2 + $0x4] sm:$0xf]
    %v71 = vld [vmem:[#allocation2 + $0x8] sm:$0xf]
    %v72 = vld [vmem:[#allocation2 + $0xc] sm:$0xf]
    %v73 = vld [vmem:[#allocation2 + $0x10] sm:$0xf]
    %v74 = vld [vmem:[#allocation2 + $0x14] sm:$0xf]
    %v75 = vld [vmem:[#allocation2 + $0x18] sm:$0xf]
    %v76 = vld [vmem:[#allocation2 + $0x1c] sm:$0xf]
    %v77 = vld [vmem:[#allocation2 + $0x20] sm:$0xf]
    %v78 = vld [vmem:[#allocation2 + $0x24] sm:$0xf]
    %v79 = vld [vmem:[#allocation2 + $0x28] sm:$0xf]
    %v80 = vld [vmem:[#allocation2 + $0x2c] sm:$0xf]
    %v81 = vld [vmem:[#allocation2 + $0x30] sm:$0xf]
    %v82 = vld [vmem:[#allocation2 + $0x34] sm:$0xf]
    %v83 = vld [vmem:[#allocation2 + $0x38] sm:$0xf]
    %v84 = vld [vmem:[#allocation2 + $0x3c] sm:$0xf]
    %v85 = vld [vmem:[#allocation4] sm:$0xf]
    %v86 = vld [vmem:[#allocation4 + $0x4] sm:$0xf]
    %v87 = vld [vmem:[#allocation4 + $0x8] sm:$0xf]
    %v88 = vld [vmem:[#allocation4 + $0xc] sm:$0xf]
    %v89 = vld [vmem:[#allocation4 + $0x10] sm:$0xf]
    %v90 = vld [vmem:[#allocation4 + $0x14] sm:$0xf]
    %v91 = vld [vmem:[#allocation4 + $0x18] sm:$0xf]
    %v92 = vld [vmem:[#allocation4 + $0x1c] sm:$0xf]
    %v93 = vld [vmem:[#allocation4 + $0x20] sm:$0xf]
    %v94 = vld [vmem:[#allocation4 + $0x24] sm:$0xf]
    %v95 = vld [vmem:[#allocation4 + $0x28] sm:$0xf]
    %v96 = vld [vmem:[#allocation4 + $0x2c] sm:$0xf]
    %v97 = vld [vmem:[#allocation4 + $0x30] sm:$0xf]
    %v98 = vld [vmem:[#allocation4 + $0x34] sm:$0xf]
    %v99 = vld [vmem:[#allocation4 + $0x38] sm:$0xf]
    %v100 = vld [vmem:[#allocation4 + $0x3c] sm:$0xf]
    %v117 = vunpack.c.l.b16 %v85
    %v118 = vunpack.c.l.b16 %v86
    %v119 = vunpack.c.l.b16 %v87
    %v120 = vunpack.c.l.b16 %v88
    %v121 = vunpack.c.l.b16 %v89
    %v122 = vunpack.c.l.b16 %v90
    %v123 = vunpack.c.l.b16 %v91
    %v124 = vunpack.c.l.b16 %v92
    %v125 = vunpack.c.l.b16 %v93
    %v126 = vunpack.c.l.b16 %v94
    %v127 = vunpack.c.l.b16 %v95
    %v128 = vunpack.c.l.b16 %v96
    %v129 = vunpack.c.l.b16 %v97
    %v130 = vunpack.c.l.b16 %v98
    %v131 = vunpack.c.l.b16 %v99
    %v132 = vunpack.c.l.b16 %v100
    %v133 = vpack.c.b16 %v118, %v117
    %v134 = vpack.c.b16 %v120, %v119
    %v135 = vpack.c.b16 %v122, %v121
    %v136 = vpack.c.b16 %v124, %v123
    %v137 = vpack.c.b16 %v126, %v125
    %v138 = vpack.c.b16 %v128, %v127
    %v139 = vpack.c.b16 %v130, %v129
    %v140 = vpack.c.b16 %v132, %v131
    %149 = vmatprep.subr.bf16.mxu0 0
    %150 = vmatpush1.bf16.msra.mxu0 %v133
    %151 = vmatprep.subr.bf16.mxu0 0
    %152 = vmatpush1.bf16.msra.mxu0 %v134
    %153 = vmatprep.subr.bf16.mxu0 0
    %154 = vmatpush1.bf16.msra.mxu0 %v135
    %155 = vmatprep.subr.bf16.mxu0 0
    %156 = vmatpush1.bf16.msra.mxu0 %v136
    %157 = vmatprep.subr.bf16.mxu0 0
    %158 = vmatpush1.bf16.msra.mxu0 %v137
    %159 = vmatprep.subr.bf16.mxu0 0
    %160 = vmatpush1.bf16.msra.mxu0 %v138
    %161 = vmatprep.subr.bf16.mxu0 0
    %162 = vmatpush1.bf16.msra.mxu0 %v139
    %163 = vmatprep.subr.bf16.mxu0 0
    %164 = vmatpush1.bf16.msra.mxu0 %v140
    %165 = vmatprep.subr.bf16.mxu0 0
    %166 = vmatpush1.bf16.msra.mxu0 0
    %167 = vmatprep.subr.bf16.mxu0 0
    %168 = vmatpush1.bf16.msra.mxu0 0
    %169 = vmatprep.subr.bf16.mxu0 0
    %170 = vmatpush1.bf16.msra.mxu0 0
    %171 = vmatprep.subr.bf16.mxu0 0
    %172 = vmatpush1.bf16.msra.mxu0 0
    %173 = vmatprep.subr.bf16.mxu0 0
    %174 = vmatpush1.bf16.msra.mxu0 0
    %175 = vmatprep.subr.bf16.mxu0 0
    %176 = vmatpush1.bf16.msra.mxu0 0
    %177 = vmatprep.subr.bf16.mxu0 0
    %178 = vmatpush1.bf16.msra.mxu0 0
    %179 = vmatprep.subr.bf16.mxu0 0
    %180 = vmatpush1.bf16.msra.mxu0 0
    %181 = vmatprep.mubr.bf16.mxu0 0
    %182 = vmatmul.mubr.bf16.gmra.mrb[0].mxu0 %v68
    %v183 = vpop.f32.mrb[0].mxu0
    %v184 = vadd.f32 0.0, %v183
    %v185 = vpop.f32.mrb[0].mxu0
    %v186 = vpop.f32.mrb[0].mxu0
    %v187 = vpop.f32.mrb[0].mxu0
    %188 = vdwg.mxu0
    %v205 = vunpack.c.l.b16 %v69
    %v206 = vunpack.c.l.b16 %v70
    %v207 = vunpack.c.l.b16 %v71
    %v208 = vunpack.c.l.b16 %v72
    %v209 = vunpack.c.l.b16 %v73
    %v210 = vunpack.c.l.b16 %v74
    %v211 = vunpack.c.l.b16 %v75
    %v212 = vunpack.c.l.b16 %v76
    %v213 = vunpack.c.l.b16 %v77
    %v214 = vunpack.c.l.b16 %v78
    %v215 = vunpack.c.l.b16 %v79
    %v216 = vunpack.c.l.b16 %v80
    %v217 = vunpack.c.l.b16 %v81
    %v218 = vunpack.c.l.b16 %v82
    %v219 = vunpack.c.l.b16 %v83
    %v220 = vunpack.c.l.b16 %v84
    %v221 = vpack.c.b16 %v206, %v205
    %v222 = vpack.c.b16 %v208, %v207
    %v223 = vpack.c.b16 %v210, %v209
    %v224 = vpack.c.b16 %v212, %v211
    %v225 = vpack.c.b16 %v214, %v213
    %v226 = vpack.c.b16 %v216, %v215
    %v227 = vpack.c.b16 %v218, %v217
    %v228 = vpack.c.b16 %v220, %v219
    %237 = vmatprep.subr.bf16.mxu0 0
    %238 = vmatpush1.bf16.msra.mxu0 %v221
    %239 = vmatprep.subr.bf16.mxu0 0
    %240 = vmatpush1.bf16.msra.mxu0 %v222
    %241 = vmatprep.subr.bf16.mxu0 0
    %242 = vmatpush1.bf16.msra.mxu0 %v223
    %243 = vmatprep.subr.bf16.mxu0 0
    %244 = vmatpush1.bf16.msra.mxu0 %v224
    %245 = vmatprep.subr.bf16.mxu0 0
    %246 = vmatpush1.bf16.msra.mxu0 %v225
    %247 = vmatprep.subr.bf16.mxu0 0
    %248 = vmatpush1.bf16.msra.mxu0 %v226
    %249 = vmatprep.subr.bf16.mxu0 0
    %250 = vmatpush1.bf16.msra.mxu0 %v227
    %251 = vmatprep.subr.bf16.mxu0 0
    %252 = vmatpush1.bf16.msra.mxu0 %v228
    %253 = vmatprep.subr.bf16.mxu0 0
    %254 = vmatpush1.bf16.msra.mxu0 0
    %255 = vmatprep.subr.bf16.mxu0 0
    %256 = vmatpush1.bf16.msra.mxu0 0
    %257 = vmatprep.subr.bf16.mxu0 0
    %258 = vmatpush1.bf16.msra.mxu0 0
    %259 = vmatprep.subr.bf16.mxu0 0
    %260 = vmatpush1.bf16.msra.mxu0 0
    %261 = vmatprep.subr.bf16.mxu0 0
    %262 = vmatpush1.bf16.msra.mxu0 0
    %263 = vmatprep.subr.bf16.mxu0 0
    %264 = vmatpush1.bf16.msra.mxu0 0
    %265 = vmatprep.subr.bf16.mxu0 0
    %266 = vmatpush1.bf16.msra.mxu0 0
    %267 = vmatprep.subr.bf16.mxu0 0
    %268 = vmatpush1.bf16.msra.mxu0 0
    %269 = vmatprep.mubr.bf16.mxu0 0
    %270 = vmatmul.mubr.bf16.gmra.mrb[0].mxu0 %v68
    %v271 = vpop.f32.mrb[0].mxu0
    %v272 = vadd.f32 %v184, %v271
    %v273 = vpop.f32.mrb[0].mxu0
    %v274 = vpop.f32.mrb[0].mxu0
    %v275 = vpop.f32.mrb[0].mxu0
    %276 = vdwg.mxu0
    %v277 = vld [vmem:[#allocation6] sm:$0xf]
    %v278 = vld [vmem:[#allocation6 + $0x4] sm:$0xf]
    %v279 = vld [vmem:[#allocation6 + $0x8] sm:$0xf]
    %v280 = vld [vmem:[#allocation6 + $0xc] sm:$0xf]
    %v281 = vld [vmem:[#allocation6 + $0x10] sm:$0xf]
    %v282 = vld [vmem:[#allocation6 + $0x14] sm:$0xf]
    %v283 = vld [vmem:[#allocation6 + $0x18] sm:$0xf]
    %v284 = vld [vmem:[#allocation6 + $0x1c] sm:$0xf]
    %v285 = vld [vmem:[#allocation6 + $0x20] sm:$0xf]
    %v286 = vld [vmem:[#allocation6 + $0x24] sm:$0xf]
    %v287 = vld [vmem:[#allocation6 + $0x28] sm:$0xf]
    %v288 = vld [vmem:[#allocation6 + $0x2c] sm:$0xf]
    %v289 = vld [vmem:[#allocation6 + $0x30] sm:$0xf]
    %v290 = vld [vmem:[#allocation6 + $0x34] sm:$0xf]
    %v291 = vld [vmem:[#allocation6 + $0x38] sm:$0xf]
    %v292 = vld [vmem:[#allocation6 + $0x3c] sm:$0xf]
    %v309 = vunpack.c.l.b16 %v277
    %v310 = vunpack.c.l.b16 %v278
    %v311 = vunpack.c.l.b16 %v279
    %v312 = vunpack.c.l.b16 %v280
    %v313 = vunpack.c.l.b16 %v281
    %v314 = vunpack.c.l.b16 %v282
    %v315 = vunpack.c.l.b16 %v283
    %v316 = vunpack.c.l.b16 %v284
    %v317 = vunpack.c.l.b16 %v285
    %v318 = vunpack.c.l.b16 %v286
    %v319 = vunpack.c.l.b16 %v287
    %v320 = vunpack.c.l.b16 %v288
    %v321 = vunpack.c.l.b16 %v289
    %v322 = vunpack.c.l.b16 %v290
    %v323 = vunpack.c.l.b16 %v291
    %v324 = vunpack.c.l.b16 %v292
    %v325 = vpack.c.b16 %v310, %v309
    %v326 = vpack.c.b16 %v312, %v311
    %v327 = vpack.c.b16 %v314, %v313
    %v328 = vpack.c.b16 %v316, %v315
    %v329 = vpack.c.b16 %v318, %v317
    %v330 = vpack.c.b16 %v320, %v319
    %v331 = vpack.c.b16 %v322, %v321
    %v332 = vpack.c.b16 %v324, %v323
    %341 = vmatprep.subr.bf16.mxu0 0
    %342 = vmatpush1.bf16.msra.mxu0 %v325
    %343 = vmatprep.subr.bf16.mxu0 0
    %344 = vmatpush1.bf16.msra.mxu0 %v326
    %345 = vmatprep.subr.bf16.mxu0 0
    %346 = vmatpush1.bf16.msra.mxu0 %v327
    %347 = vmatprep.subr.bf16.mxu0 0
    %348 = vmatpush1.bf16.msra.mxu0 %v328
    %349 = vmatprep.subr.bf16.mxu0 0
    %350 = vmatpush1.bf16.msra.mxu0 %v329
    %351 = vmatprep.subr.bf16.mxu0 0
    %352 = vmatpush1.bf16.msra.mxu0 %v330
    %353 = vmatprep.subr.bf16.mxu0 0
    %354 = vmatpush1.bf16.msra.mxu0 %v331
    %355 = vmatprep.subr.bf16.mxu0 0
    %356 = vmatpush1.bf16.msra.mxu0 %v332
    %357 = vmatprep.subr.bf16.mxu0 0
    %358 = vmatpush1.bf16.msra.mxu0 0
    %359 = vmatprep.subr.bf16.mxu0 0
    %360 = vmatpush1.bf16.msra.mxu0 0
    %361 = vmatprep.subr.bf16.mxu0 0
    %362 = vmatpush1.bf16.msra.mxu0 0
    %363 = vmatprep.subr.bf16.mxu0 0
    %364 = vmatpush1.bf16.msra.mxu0 0
    %365 = vmatprep.subr.bf16.mxu0 0
    %366 = vmatpush1.bf16.msra.mxu0 0
    %367 = vmatprep.subr.bf16.mxu0 0
    %368 = vmatpush1.bf16.msra.mxu0 0
    %369 = vmatprep.subr.bf16.mxu0 0
    %370 = vmatpush1.bf16.msra.mxu0 0
    %371 = vmatprep.subr.bf16.mxu0 0
    %372 = vmatpush1.bf16.msra.mxu0 0
    %373 = vmatprep.mubr.bf16.mxu0 0
    %374 = vmatmul.mubr.bf16.gmra.mrb[0].mxu0 %v68
    %v375 = vpop.f32.mrb[0].mxu0
    %v376 = vadd.f32 0.0, %v375
    %v377 = vpop.f32.mrb[0].mxu0
    %v378 = vpop.f32.mrb[0].mxu0
    %v379 = vpop.f32.mrb[0].mxu0
    %380 = vdwg.mxu0
    %v381 = vadd.f32 %v272, %v376
    %382 = vst [vmem:[%s4] sm:$0xff] %v381
    // Predicated region
    $region30: #{_forward_impl.1} parent=1 // pred_check
      _
    $region31: #{_forward_impl.1} parent=1 // pred_check_branch
      %384 = sbr.rel (0) target = $region33
    $region32: #{_forward_impl.1} parent=1 // pred_region
      _
    $region33: #{_forward_impl.1} parent=1 // pred_fallthru
      _
    // Predicated region
    $region34: #{_forward_impl.1} parent=1 // pred_check
      _
    $region35: #{_forward_impl.1} parent=1 // pred_check_branch
      %386 = sbr.rel (0) target = $region37
    $region36: #{_forward_impl.1} parent=1 // pred_region
      _
    $region37: #{_forward_impl.1} parent=1 // pred_fallthru
      _
    %387 = vsyncpa [#allocation3], 1
    %388 = vsyncpa [#allocation5], 1

</llo_original>
